<compile_context>
chip_gen: v7x
topology: tpu7x:2x2x1
jax: 0.10.0
libtpu: 0.0.40
codegen_flags: <defaults>
</compile_context>

<pallas_src>
import functools

import jax
import jax.numpy as jnp
from jax.experimental import pallas as pl
from jax.experimental.pallas import tpu as pltpu

F32 = jnp.float32
BF16 = jnp.bfloat16

SCALE_W = -0.606531
LN1_EPS = 1e-5
LNX_EPS = 0.00064          # module builds nn.LayerNorm(head_size, eps=0.00064)
VMEM_LIMIT = 64 * 1024 * 1024   # fits v5e/v6e (128 MiB) and v7x (64 MiB) physical


# --------------------------------------------------------------------------- #
# K1: ln_1 + token shift -> xcat = [xn | sx]  (bf16, ready for the fused GEMM) #
# --------------------------------------------------------------------------- #

def _ln_shift_kernel(x_ref, s1_ref, w_ref, b_ref, xcat_ref, xlast_ref, *, eps, T, H):
    x = x_ref[...]                                        # (T, H) f32
    mu = jnp.mean(x, axis=-1, keepdims=True)
    var = jnp.mean(jnp.square(x - mu), axis=-1, keepdims=True)
    xn = (x - mu) * jax.lax.rsqrt(var + eps) * w_ref[...] + b_ref[...]
    # write the two halves directly (no (T, 2H) concat temp)
    xcat_ref[:, 0:H] = xn.astype(xcat_ref.dtype)
    xcat_ref[0:1, H:2 * H] = (s1_ref[...] - xn[0:1, :]).astype(xcat_ref.dtype)
    if T > 1:
        xcat_ref[1:T, H:2 * H] = (xn[:-1, :] - xn[1:, :]).astype(xcat_ref.dtype)
    xlast_ref[...] = xn[T - 1:T, :]
    # TODO(synk): T-tile this kernel (carry previous xn row in SMEM/VMEM) for long T.


def ln_shift_pallas(x, state1, ln_w, ln_b):
    T, H = x.shape
    kern = functools.partial(_ln_shift_kernel, eps=LN1_EPS, T=T, H=H)
    return pl.pallas_call(
        kern,
        grid=(1,),
        in_specs=[pl.BlockSpec((T, H), lambda i: (0, 0)),
                  pl.BlockSpec((1, H), lambda i: (0, 0)),
                  pl.BlockSpec((1, H), lambda i: (0, 0)),
                  pl.BlockSpec((1, H), lambda i: (0, 0))],
        out_specs=(pl.BlockSpec((T, 2 * H), lambda i: (0, 0)),
                   pl.BlockSpec((1, H), lambda i: (0, 0))),
        out_shape=(jax.ShapeDtypeStruct((T, 2 * H), BF16),
                   jax.ShapeDtypeStruct((1, H), F32)),
        compiler_params=pltpu.CompilerParams(vmem_limit_bytes=VMEM_LIMIT),
    )(x, state1, ln_w.reshape(1, H), ln_b.reshape(1, H))


# --------------------------------------------------------------------------- #
# K2: generic tiled matmul (bf16 inputs, f32 accumulation, optional residual)  #
# --------------------------------------------------------------------------- #

def _matmul_kernel(x_ref, w_ref, o_ref, acc_ref):
    @pl.when(pl.program_id(2) == 0)
    def _():
        acc_ref[...] = jnp.zeros_like(acc_ref)

    acc_ref[...] += jnp.dot(x_ref[...], w_ref[...],
                            preferred_element_type=jnp.float32)

    @pl.when(pl.program_id(2) == pl.num_programs(2) - 1)
    def _():
        o_ref[...] = acc_ref[...].astype(o_ref.dtype)


def _matmul_resid_kernel(x_ref, w_ref, r_ref, o_ref, acc_ref):
    @pl.when(pl.program_id(2) == 0)
    def _():
        acc_ref[...] = jnp.zeros_like(acc_ref)

    acc_ref[...] += jnp.dot(x_ref[...], w_ref[...],
                            preferred_element_type=jnp.float32)

    @pl.when(pl.program_id(2) == pl.num_programs(2) - 1)
    def _():
        o_ref[...] = (acc_ref[...] + r_ref[...].astype(jnp.float32)).astype(o_ref.dtype)


def _pick_tile(dim, target):
    # NOTE: fallback returns the full dim (always a legal block) -- at odd real
    # sizes this can be VMEM-hungry; pad the model dims or lower `target`.
    if dim <= target:
        return dim
    t = target
    while t >= 8 and dim % t != 0:
        t //= 2
    return t if (t >= 8 and dim % t == 0) else dim


def matmul_pallas(x, w, *, residual=None, tm=256, tn=256, tk=512, out_dtype=F32):
    """x: (M, K), w: (K, N) -- bf16 operands, f32 VMEM accumulator."""
    M, K = x.shape
    K2, N = w.shape
    assert K == K2
    btm, btn, btk = _pick_tile(M, tm), _pick_tile(N, tn), _pick_tile(K, tk)
    grid = (M // btm, N // btn, K // btk)
    in_specs = [pl.BlockSpec((btm, btk), lambda i, j, k: (i, k)),
                pl.BlockSpec((btk, btn), lambda i, j, k: (k, j))]
    args = [x, w]
    kern = _matmul_kernel
    if residual is not None:
        in_specs.append(pl.BlockSpec((btm, btn), lambda i, j, k: (i, j)))
        args.append(residual)
        kern = _matmul_resid_kernel
    return pl.pallas_call(
        kern,
        grid=grid,
        in_specs=in_specs,
        out_specs=pl.BlockSpec((btm, btn), lambda i, j, k: (i, j)),
        out_shape=jax.ShapeDtypeStruct((M, N), out_dtype),
        scratch_shapes=[pltpu.VMEM((btm, btn), F32)],
        compiler_params=pltpu.CompilerParams(
            dimension_semantics=("parallel", "parallel", "arbitrary"),
            vmem_limit_bytes=VMEM_LIMIT),
    )(*args)


# --------------------------------------------------------------------------- #
# K3: per head-group x T-chunk: LoRA ups + mixing + WKV recurrence + epilogue  #
# --------------------------------------------------------------------------- #

def _wkv_fused_kernel(rkv_ref, lora_ref, pvec_ref, w2_ref, a2_ref, g2_ref,
                      state_ref, *rest,
                      TC, NG, D, Dw, Da, Dg, Dv, has_vlora, eps_lnx):
    if has_vlora:
        v2_ref, vfirst_ref = rest[0], rest[1]
        rest = rest[2:]
    mixed_ref, s2out_ref = rest[0], rest[1]
    (wh, kh, vh, ah, bh, wrh, brh, krh, st, yh) = rest[2:]

    f32 = jnp.float32
    GW = NG * D
    c = pl.program_id(1)
    n_chunks = pl.num_programs(1)

    blk = rkv_ref[...].astype(f32)             # (TC, 3*GW): [r | k | v] of this group
    r_sl = blk[:, 0:GW]
    k_raw = blk[:, GW:2 * GW]
    v_raw = blk[:, 2 * GW:3 * GW]
    lora = lora_ref[...]                       # (TC, CLp) bf16

    kk_row = pvec_ref[0:1, :]
    ka_row = pvec_ref[1:2, :]
    rk_row = pvec_ref[2:3, :]
    lnw_row = pvec_ref[3:4, :]
    lnb_row = pvec_ref[4:5, :]
    w0_row = pvec_ref[5:6, :]
    a0_row = pvec_ref[6:7, :]
    v0_row = pvec_ref[7:8, :]

    # ---- LoRA up-projections + activations (bf16 operands on the MXU) ----
    w1o = lora[:, 0:Dw].astype(f32)
    a1o = lora[:, Dw:Dw + Da]
    g1o = lora[:, Dw + Da:Dw + Da + Dg].astype(f32)
    td = jnp.dot(jnp.tanh(w1o).astype(BF16), w2_ref[...],
                 preferred_element_type=f32) + w0_row
    w_pre = SCALE_W * jax.nn.sigmoid(td)
    a_sig = jax.nn.sigmoid(
        jnp.dot(a1o, a2_ref[...], preferred_element_type=f32) + a0_row)
    gate = jnp.dot(jax.nn.sigmoid(g1o).astype(BF16), g2_ref[...],
                   preferred_element_type=f32)

    # ---- key / value mixing (lane-dense on the (TC, GW) slab) ----
    kk_scaled = k_raw * kk_row
    k_mix = k_raw * (1.0 + (a_sig - 1.0) * ka_row)
    if has_vlora:
        v1o = lora[:, Dw + Da + Dg:Dw + Da + Dg + Dv]
        vmix = jax.nn.sigmoid(
            jnp.dot(v1o, v2_ref[...], preferred_element_type=f32) + v0_row)
        v_fin = v_raw + (vfirst_ref[...] - v_raw) * vmix
    else:
        v_fin = v_raw
    wexp = jnp.exp(w_pre)                      # exp(decay) hoisted off the serial chain

    # ---- stage head-major scratch; precompute everything that is not state-
    #      dependent (w*r, b.r, k.r) so the serial loop is as short as possible.
    for h in range(NG):                        # NG <= 2 in practice (gw<=128, D>=64)
        lo, hi = h * D, (h + 1) * D
        kk_h = kk_scaled[:, lo:hi]
        kk_h = kk_h / (jnp.sqrt(jnp.sum(kk_h * kk_h, axis=-1, keepdims=True)) + 1e-12)
        r_h = r_sl[:, lo:hi]
        w_h = wexp[:, lo:hi]
        k_h = k_mix[:, lo:hi]
        v_h = v_fin[:, lo:hi]
        b_h = kk_h * a_sig[:, lo:hi]
        wh[:, h, :] = w_h
        kh[:, h, :] = k_h
        vh[:, h, :] = v_h
        ah[:, h, :] = -kk_h
        bh[:, h, :] = b_h
        wrh[:, h, :] = w_h * r_h
        brh[:, h, :] = jnp.sum(b_h * r_h, axis=-1, keepdims=True)
        krh[:, h, :] = jnp.sum(k_h * r_h, axis=-1, keepdims=True)

    @pl.when(c == 0)
    def _():
        st[...] = state_ref[...]               # load carried state at first chunk

    # ---- sequential WKV recurrence.  y_t is re-associated against the OLD
    #      state:  y_t = S_old (w∘r) + (S_old a)(b.r) + v (k.r), so the second
    #      lane-reduce + row write are off the state-update critical path. ----
    def step(t):
        a_t = ah[t]; b_t = bh[t]; k_t = kh[t]
        v_t = vh[t]; w_t = wh[t]; wr_t = wrh[t]
        s = st[...]                                              # (NG, D, D)
        sa = jnp.sum(s * a_t[:, None, :], axis=2)                # S_old @ a_t
        sowr = jnp.sum(s * wr_t[:, None, :], axis=2)             # S_old @ (w∘r)
        yh[t] = sowr + sa * brh[t] + v_t * krh[t]
        st[...] = (s * w_t[:, None, :]
                   + sa[:, :, None] * b_t[:, None, :]            # (S a) b^T
                   + v_t[:, :, None] * k_t[:, None, :])          # v k^T

    nfull = TC // 2

    def step2(i, carry):                       # manual 2x unroll for LLO visibility
        step(2 * i)
        step(2 * i + 1)
        return carry

    jax.lax.fori_loop(0, nfull, step2, 0)
    if TC % 2:
        step(TC - 1)
    # TODO(synk): chunked/WY-transform so the bulk of this loop runs on the MXU.

    @pl.when(c == n_chunks - 1)
    def _():
        s2out_ref[...] = st[...]

    # ---- fused epilogue: per-head ln_x + affine + r.k.r_k residual + gate,
    #      assembled into ONE lane-dense bf16 store. ----
    pieces = []
    for h in range(NG):
        lo, hi = h * D, (h + 1) * D
        xh_ = yh[:, h, :]
        mu = jnp.mean(xh_, axis=-1, keepdims=True)
        cen = xh_ - mu
        var = jnp.mean(cen * cen, axis=-1, keepdims=True)
        xn_h = cen * jax.lax.rsqrt(var + eps_lnx) * lnw_row[:, lo:hi] + lnb_row[:, lo:hi]
        rkv_h = jnp.sum(r_sl[:, lo:hi] * k_mix[:, lo:hi] * rk_row[:, lo:hi],
                        axis=-1, keepdims=True) * v_fin[:, lo:hi]
        pieces.append(xn_h + rkv_h)
    slab = pieces[0] if NG == 1 else jnp.concatenate(pieces, axis=-1)
    mixed_ref[...] = (slab * gate).astype(mixed_ref.dtype)


def wkv_fused_pallas(s1_rkv, s1_lora, pvec, w2, a2, g2, state2, *,
                     v2=None, v_first=None, T, H, D, gw, tc, has_vlora, lora_dims):
    NG = gw // D
    n_groups = H // gw
    n_chunks = T // tc
    N = H // D
    Dw, Da, Dg, Dv = lora_dims
    CLp = s1_lora.shape[1]
    kern = functools.partial(_wkv_fused_kernel, TC=tc, NG=NG, D=D,
                             Dw=Dw, Da=Da, Dg=Dg, Dv=Dv,
                             has_vlora=has_vlora, eps_lnx=LNX_EPS)
    in_specs = [pl.BlockSpec((tc, 3 * gw), lambda g, c: (c, g)),
                pl.BlockSpec((tc, CLp), lambda g, c: (c, 0)),
                pl.BlockSpec((8, gw), lambda g, c: (0, g)),
                pl.BlockSpec((w2.shape[0], gw), lambda g, c: (0, g)),
                pl.BlockSpec((a2.shape[0], gw), lambda g, c: (0, g)),
                pl.BlockSpec((g2.shape[0], gw), lambda g, c: (0, g)),
                pl.BlockSpec((NG, D, D), lambda g, c: (g, 0, 0))]
    args = [s1_rkv, s1_lora, pvec, w2, a2, g2, state2]
    if has_vlora:
        in_specs += [pl.BlockSpec((v2.shape[0], gw), lambda g, c: (0, g)),
                     pl.BlockSpec((tc, gw), lambda g, c: (c, g))]
        args += [v2, v_first]                  # layer 0 never DMAs v_first / v2
    scratch = ([pltpu.VMEM((tc, NG, D), F32) for _ in range(6)]      # w,k,v,a,b,wr
               + [pltpu.VMEM((tc, NG, 1), F32) for _ in range(2)]    # b.r, k.r
               + [pltpu.VMEM((NG, D, D), F32),                       # carried state
                  pltpu.VMEM((tc, NG, D), F32)])                     # y rows
    return pl.pallas_call(
        kern,
        grid=(n_groups, n_chunks),
        in_specs=in_specs,
        out_specs=(pl.BlockSpec((tc, gw), lambda g, c: (c, g)),
                   pl.BlockSpec((NG, D, D), lambda g, c: (g, 0, 0))),
        out_shape=(jax.ShapeDtypeStruct((T, H), BF16),
                   jax.ShapeDtypeStruct((N, D, D), F32)),
        scratch_shapes=scratch,
        compiler_params=pltpu.CompilerParams(
            dimension_semantics=("parallel", "arbitrary"),
            vmem_limit_bytes=VMEM_LIMIT),
    )(*args)


# --------------------------------------------------------------------------- #
# host-side parameter packing (one-time)                                       #
# --------------------------------------------------------------------------- #

def _group_width(H, D):
    gw = D
    while gw * 2 <= min(H, 128) and H % (gw * 2) == 0:
        gw *= 2
    if H // gw > 1 and (3 * gw) % 128 != 0:
        gw = H                      # fall back to a single head group
    return gw


def _pick_chunk(T, target=256):
    if T <= target:
        return T
    for c in range(target, 0, -1):
        if T % c == 0:
            return c
    return T


def prepare_params(params, *, hidden_size, head_size, layer_id):
    """Fold token-shift lerps into the weights, build ONE fused projection
    weight [R|K|V interleaved per group | LoRA-down padded to 128], cast GEMM
    weights to bf16, stack per-channel parameters."""
    H, D = hidden_size, head_size
    gw = _group_width(H, D)
    n_groups = H // gw
    has_vlora = layer_id != 0

    def fold(base, mu):             # base acts as x @ base
        return jnp.concatenate([base, mu[:, None] * base], axis=0)     # (2H, O)

    wr = fold(params['Wr'].T, params['x_r'])
    wk = fold(params['Wk'].T, params['x_k'])
    wv = fold(params['Wv'].T, params['x_v'])
    # interleave columns per head group: [r_g | k_g | v_g]
    stk = jnp.stack([wr, wk, wv], axis=0).reshape(3, 2 * H, n_groups, gw)
    w_rkv = jnp.transpose(stk, (1, 2, 0, 3)).reshape(2 * H, 3 * H)

    lora_parts = [fold(params['w1'], params['x_w']),
                  fold(params['a1'], params['x_a']),
                  fold(params['g1'], params['x_g'])]
    lora_dims = [params['w1'].shape[1], params['a1'].shape[1], params['g1'].shape[1]]
    if has_vlora:
        lora_parts.append(fold(params['v1'], params['x_v']))
        lora_dims.append(params['v1'].shape[1])
    else:
        lora_dims.append(0)
    w_lora = jnp.concatenate(lora_parts, axis=1)
    cl = w_lora.shape[1]
    cl_pad = ((cl + 127) // 128) * 128          # lane-dense LoRA output columns
    if cl_pad != cl:
        w_lora = jnp.pad(w_lora, ((0, 0), (0, cl_pad - cl)))

    w_proj = jnp.concatenate([w_rkv, w_lora], axis=1).astype(BF16)

    v0 = params['v0'] if has_vlora else jnp.zeros((H,), F32)
    pvec = jnp.stack([params['k_k'], params['k_a'], params['r_k'],
                      params['ln_x.weight'], params['ln_x.bias'],
                      params['w0'], params['a0'], v0], axis=0).astype(F32)

    prep = dict(
        ln1_w=params['ln1.weight'], ln1_b=params['ln1.bias'],
        w_proj=w_proj, wo_t=params['Wo'].T.astype(BF16),
        w2=params['w2'].astype(BF16), a2=params['a2'].astype(BF16),
        g2=params['g2'].astype(BF16), pvec=pvec,
        gw=gw, cl_pad=cl_pad, lora_dims=tuple(lora_dims), has_vlora=has_vlora)
    if has_vlora:
        prep['v2'] = params['v2'].astype(BF16)
    return prep


# --------------------------------------------------------------------------- #
# forward pass (Pallas)                                                        #
# --------------------------------------------------------------------------- #

def rwkv7_self_attention_pallas(prep, x, state1, state2, v_first, *,
                                hidden_size, head_size, layer_id):
    H, D = hidden_size, head_size
    N = H // D
    B, T, _ = x.shape
    assert B == 1
    gw = prep['gw']
    n_groups = H // gw
    tc = _pick_chunk(T)

    # ln_1 + token shift -> bf16 [xn | sx]
    xcat, state1_out = ln_shift_pallas(x[0], state1, prep['ln1_w'], prep['ln1_b'])

    # ONE fused projection GEMM (R/K/V + all LoRA downs), bf16 output
    proj = matmul_pallas(xcat, prep['w_proj'], out_dtype=BF16)
    s1_rkv = proj[:, :3 * H]                   # group-interleaved [r|k|v]
    s1_lora = proj[:, 3 * H:]                  # (T, CLp) lane-dense

    mixed, state2_out = wkv_fused_pallas(
        s1_rkv, s1_lora, prep['pvec'], prep['w2'], prep['a2'], prep['g2'], state2,
        v2=prep.get('v2'),
        v_first=(v_first.reshape(T, H) if prep['has_vlora'] else None),
        T=T, H=H, D=D, gw=gw, tc=tc, has_vlora=prep['has_vlora'],
        lora_dims=prep['lora_dims'])

    # output projection with the block residual fused into the finalize
    y = matmul_pallas(mixed, prep['wo_t'], residual=x[0], out_dtype=F32)[None]

    if layer_id == 0:
        v_first_out = s1_rkv.astype(F32).reshape(T, n_groups, 3, gw)[:, :, 2, :]
        v_first_out = v_first_out.reshape(T, N, D)
    else:
        v_first_out = v_first
    return y, state1_out, state2_out, v_first_out


# --------------------------------------------------------------------------- #
# pure-JAX reference.  kernel_policy=True mirrors the kernel's bf16-GEMM /     #
# f32-accumulate policy (tight check); False follows the module order in f32.  #
# --------------------------------------------------------------------------- #

def rwkv7_self_attention_ref(params, x, state1, state2, v_first, *,
                             hidden_size, head_size, layer_id, kernel_policy=False):
    H, D = hidden_size, head_size
    N = H // D
    B, T, _ = x.shape
    hi = jax.lax.Precision.HIGHEST

    def q(t):
        return t.astype(BF16).astype(F32) if kernel_policy else t

    def mm(a, w):
        if kernel_policy:
            return jnp.dot(a.astype(BF16), w.astype(BF16), preferred_element_type=F32)
        return jnp.dot(a, w, precision=hi)

    def fold(base, mu_):
        return jnp.concatenate([base, mu_[:, None] * base], axis=0)

    xh = x[0]
    mu = jnp.mean(xh, -1, keepdims=True)
    var = jnp.mean(jnp.square(xh - mu), -1, keepdims=True)
    xn = (xh - mu) * jax.lax.rsqrt(var + LN1_EPS) * params['ln1.weight'] + params['ln1.bias']
    past = jnp.concatenate([state1, xn[:-1]], axis=0)
    sx = past - xn
    state1_out = xn[-1:]

    if kernel_policy:
        xcat = q(jnp.concatenate([xn, sx], axis=-1))
        r = q(mm(xcat, fold(params['Wr'].T, params['x_r'])))
        k = q(mm(xcat, fold(params['Wk'].T, params['x_k'])))
        v = q(mm(xcat, fold(params['Wv'].T, params['x_v'])))
        w1o = q(mm(xcat, fold(params['w1'], params['x_w'])))
        a1o = q(mm(xcat, fold(params['a1'], params['x_a'])))
        g1o = q(mm(xcat, fold(params['g1'], params['x_g'])))
        v1o = q(mm(xcat, fold(params['v1'], params['x_v']))) if layer_id != 0 else None
    else:
        xr = xn + sx * params['x_r']; xw = xn + sx * params['x_w']
        xk = xn + sx * params['x_k']; xv = xn + sx * params['x_v']
        xa = xn + sx * params['x_a']; xg = xn + sx * params['x_g']
        r = mm(xr, params['Wr'].T); k = mm(xk, params['Wk'].T); v = mm(xv, params['Wv'].T)
        w1o = mm(xw, params['w1']); a1o = mm(xa, params['a1']); g1o = mm(xg, params['g1'])
        v1o = mm(xv, params['v1']) if layer_id != 0 else None

    td = mm(jnp.tanh(w1o), params['w2']) + params['w0']
    w_pre = SCALE_W * jax.nn.sigmoid(td)
    a_sig = jax.nn.sigmoid(mm(a1o, params['a2']) + params['a0'])
    gate = mm(jax.nn.sigmoid(g1o), params['g2'])

    kk = (k * params['k_k']).reshape(T, N, D)
    kk = kk / (jnp.sqrt(jnp.sum(kk * kk, -1, keepdims=True)) + 1e-12)
    k = k * (1.0 + (a_sig - 1.0) * params['k_a'])
    if layer_id == 0:
        v_first_out = v.reshape(T, N, D)
    else:
        vmix = jax.nn.sigmoid(mm(v1o, params['v2']) + params['v0'])
        v = v + (v_first.reshape(T, H) - v) * vmix
        v_first_out = v_first

    rh = r.reshape(T, N, D)
    wh = jnp.exp(w_pre).reshape(T, N, D)
    kh = k.reshape(T, N, D)
    vh = v.reshape(T, N, D)
    ah = -kk
    bh = kk * a_sig.reshape(T, N, D)

    s = state2
    ys = []
    for t in range(T):
        sa = jnp.sum(s * ah[t][:, None, :], axis=2, keepdims=True)
        s = (s * wh[t][:, None, :] + sa * bh[t][:, None, :]
             + vh[t][:, :, None] * kh[t][:, None, :])
        ys.append(jnp.sum(s * rh[t][:, None, :], axis=2))
    wkv_x = jnp.stack(ys, axis=0)
    state2_out = s

    mu2 = jnp.mean(wkv_x, -1, keepdims=True)
    cen2 = wkv_x - mu2
    var2 = jnp.mean(cen2 * cen2, -1, keepdims=True)
    xg_ = (cen2 * jax.lax.rsqrt(var2 + LNX_EPS)).reshape(T, H)
    xg_ = xg_ * params['ln_x.weight'] + params['ln_x.bias']
    rkv = (jnp.sum(rh * kh * params['r_k'].reshape(N, D), -1, keepdims=True) * vh).reshape(T, H)
    mixed = (xg_ + rkv) * gate
    out = mm(q(mixed), params['Wo'].T)
    y = x + out[None]
    return y, state1_out, state2_out, v_first_out


# --------------------------------------------------------------------------- #
# parameter construction                                                       #
# --------------------------------------------------------------------------- #

def init_params(key, H, D, layer_id, d_decay=16, d_aaa=16, d_gate=16, d_mv=16):
    keys = iter(jax.random.split(key, 32))

    def nrm(shape, s=0.1):
        return jax.random.normal(next(keys), shape, F32) * s

    p = {}
    p['ln1.weight'] = 1.0 + nrm((H,), 0.05)
    p['ln1.bias'] = nrm((H,), 0.05)
    for name in ['x_r', 'x_w', 'x_k', 'x_v', 'x_a', 'x_g']:
        p[name] = nrm((H,), 0.3)
    p['Wr'] = nrm((H, H))          # torch nn.Linear weight layout (out, in)
    p['Wk'] = nrm((H, H))
    p['Wv'] = nrm((H, H))
    p['Wo'] = nrm((H, H))
    p['w1'] = nrm((H, d_decay)); p['w2'] = nrm((d_decay, H)); p['w0'] = nrm((H,), 0.5)
    p['a1'] = nrm((H, d_aaa));   p['a2'] = nrm((d_aaa, H));   p['a0'] = nrm((H,), 0.5)
    p['g1'] = nrm((H, d_gate));  p['g2'] = nrm((d_gate, H))
    if layer_id != 0:
        p['v1'] = nrm((H, d_mv)); p['v2'] = nrm((d_mv, H)); p['v0'] = nrm((H,), 0.5)
    p['k_k'] = 1.0 + nrm((H,), 0.1)
    p['k_a'] = 1.0 + nrm((H,), 0.1)
    p['r_k'] = nrm((H,), 0.1)
    p['ln_x.weight'] = 1.0 + nrm((H,), 0.05)
    p['ln_x.bias'] = nrm((H,), 0.05)
    return p


# --------------------------------------------------------------------------- #
# main                                                                         #
# --------------------------------------------------------------------------- #

if __name__ == "__main__":
    H, D, T = 32, 16, 8          # hidden, head_size, seq_length  (num_heads = 2)
    N = H // D

    key = jax.random.PRNGKey(0)
    kx, ks1, ks2, kv, kp0, kp1 = jax.random.split(key, 6)

    x = jax.random.normal(kx, (1, T, H), F32) * 0.5
    state1 = jax.random.normal(ks1, (1, H), F32) * 0.5
    state2 = jax.random.normal(ks2, (N, D, D), F32) * 0.1
    v_first = jax.random.normal(kv, (T, N, D), F32) * 0.5

    for layer_id, kp in ((1, kp1), (0, kp0)):          # exercise both kernel paths
        params = init_params(kp, H, D, layer_id)
        prep = prepare_params(params, hidden_size=H, head_size=D, layer_id=layer_id)

        outs = rwkv7_self_attention_pallas(
            prep, x, state1, state2, v_first,
            hidden_size=H, head_size=D, layer_id=layer_id)
        jax.block_until_ready(outs)
        y, s1o, s2o, vfo = outs

        # reference #1: mirrors the kernel's bf16-GEMM precision policy (tight)
        y_k, s1_k, s2_k, vf_k = rwkv7_self_attention_ref(
            params, x, state1, state2, v_first,
            hidden_size=H, head_size=D, layer_id=layer_id, kernel_policy=True)
        for got, want in ((y, y_k), (s1o, s1_k), (s2o, s2_k), (vfo, vf_k)):
            assert jnp.allclose(got, want, atol=5e-3, rtol=5e-3), \
                float(jnp.max(jnp.abs(got - want)))

        # reference #2: full-f32 module-order math (looser: kernel runs bf16 MXU)
        y_f, s1_f, s2_f, vf_f = rwkv7_self_attention_ref(
            params, x, state1, state2, v_first,
            hidden_size=H, head_size=D, layer_id=layer_id, kernel_policy=False)
        for got, want in ((y, y_f), (s1o, s1_f), (s2o, s2_f), (vfo, vf_f)):
            assert jnp.allclose(got, want, atol=6e-2, rtol=6e-2), \
                float(jnp.max(jnp.abs(got - want)))

    print("KERNEL_OK")
</pallas_src>

<mosaic_0001>
module attributes {stable_mosaic.version = 11 : i64} {
  func.func @_ln_shift_kernel(%arg0: i32, %arg1: memref<8x32xf32, #tpu.memory_space<vmem>>, %arg2: memref<1x32xf32, #tpu.memory_space<vmem>>, %arg3: memref<1x32xf32, #tpu.memory_space<vmem>>, %arg4: memref<1x32xf32, #tpu.memory_space<vmem>>, %arg5: memref<8x64xbf16, #tpu.memory_space<vmem>>, %arg6: memref<1x32xf32, #tpu.memory_space<vmem>>) attributes {dimension_semantics = [#tpu.dimension_semantics<arbitrary>], iteration_bounds = array<i64: 1>, scalar_prefetch = 0 : i64, scratch_operands = 0 : i64, tpu.core_type = #tpu.core_type<tc>, window_params = [{pipeline_mode = #tpu.pipeline_mode<synchronous>, transform_indices = @transform_0, window_bounds = array<i64: 8, 32>}, {pipeline_mode = #tpu.pipeline_mode<synchronous>, transform_indices = @transform_1, window_bounds = array<i64: 1, 32>}, {pipeline_mode = #tpu.pipeline_mode<synchronous>, transform_indices = @transform_2, window_bounds = array<i64: 1, 32>}, {pipeline_mode = #tpu.pipeline_mode<synchronous>, transform_indices = @transform_3, window_bounds = array<i64: 1, 32>}, {pipeline_mode = #tpu.pipeline_mode<synchronous>, transform_indices = @transform_4, window_bounds = array<i64: 8, 64>}, {pipeline_mode = #tpu.pipeline_mode<synchronous>, transform_indices = @transform_5, window_bounds = array<i64: 1, 32>}]} {
    %c0 = arith.constant 0 : index
    %c0_0 = arith.constant 0 : index
    %0 = vector.load %arg1[%c0, %c0_0] : memref<8x32xf32, #tpu.memory_space<vmem>>, vector<8x32xf32>
    %cst = arith.constant dense<0.000000e+00> : vector<8xf32>
    %1 = vector.multi_reduction <add>, %0, %cst [1] : vector<8x32xf32> to vector<8xf32>
    %2 = vector.shape_cast %1 : vector<8xf32> to vector<8x1xf32>
    %cst_1 = arith.constant 3.200000e+01 : f32
    %3 = vector.broadcast %cst_1 : f32 to vector<8x1xf32>
    %4 = arith.divf %2, %3 : vector<8x1xf32>
    %5 = vector.broadcast %4 : vector<8x1xf32> to vector<8x32xf32>
    %6 = arith.subf %0, %5 : vector<8x32xf32>
    %7 = arith.mulf %6, %6 : vector<8x32xf32>
    %cst_2 = arith.constant dense<0.000000e+00> : vector<8xf32>
    %8 = vector.multi_reduction <add>, %7, %cst_2 [1] : vector<8x32xf32> to vector<8xf32>
    %9 = vector.shape_cast %8 : vector<8xf32> to vector<8x1xf32>
    %cst_3 = arith.constant 3.200000e+01 : f32
    %10 = vector.broadcast %cst_3 : f32 to vector<8x1xf32>
    %11 = arith.divf %9, %10 : vector<8x1xf32>
    %12 = vector.broadcast %4 : vector<8x1xf32> to vector<8x32xf32>
    %13 = arith.subf %0, %12 : vector<8x32xf32>
    %cst_4 = arith.constant 9.99999974E-6 : f32
    %14 = vector.broadcast %cst_4 : f32 to vector<8x1xf32>
    %15 = arith.addf %11, %14 : vector<8x1xf32>
    %16 = math.rsqrt %15 : vector<8x1xf32>
    %17 = vector.broadcast %16 : vector<8x1xf32> to vector<8x32xf32>
    %18 = arith.mulf %13, %17 : vector<8x32xf32>
    %c0_5 = arith.constant 0 : index
    %c0_6 = arith.constant 0 : index
    %19 = vector.load %arg3[%c0_5, %c0_6] : memref<1x32xf32, #tpu.memory_space<vmem>>, vector<1x32xf32>
    %20 = vector.broadcast %19 : vector<1x32xf32> to vector<8x32xf32>
    %21 = arith.mulf %18, %20 : vector<8x32xf32>
    %c0_7 = arith.constant 0 : index
    %c0_8 = arith.constant 0 : index
    %22 = vector.load %arg4[%c0_7, %c0_8] : memref<1x32xf32, #tpu.memory_space<vmem>>, vector<1x32xf32>
    %23 = vector.broadcast %22 : vector<1x32xf32> to vector<8x32xf32>
    %24 = arith.addf %21, %23 : vector<8x32xf32>
    %25 = arith.truncf %24 : vector<8x32xf32> to vector<8x32xbf16>
    %c0_9 = arith.constant 0 : index
    %c0_10 = arith.constant 0 : index
    %26 = vector.load %arg5[%c0_9, %c0_10] : memref<8x64xbf16, #tpu.memory_space<vmem>>, vector<8x32xbf16>
    tpu.vector_store %arg5[%c0_9, %c0_10], %25 {strides = array<i32>} : memref<8x64xbf16, #tpu.memory_space<vmem>>, vector<8x32xbf16>,
    %c0_11 = arith.constant 0 : index
    %c0_12 = arith.constant 0 : index
    %27 = vector.load %arg2[%c0_11, %c0_12] : memref<1x32xf32, #tpu.memory_space<vmem>>, vector<1x32xf32>
    %28 = vector.extract_strided_slice %24 {offsets = [0, 0], sizes = [1, 32], strides = [1, 1]} : vector<8x32xf32> to vector<1x32xf32>
    %29 = arith.subf %27, %28 : vector<1x32xf32>
    %30 = arith.truncf %29 : vector<1x32xf32> to vector<1x32xbf16>
    %c0_13 = arith.constant 0 : index
    %c32 = arith.constant 32 : index
    %31 = vector.load %arg5[%c0_13, %c32] : memref<8x64xbf16, #tpu.memory_space<vmem>>, vector<1x32xbf16>
    tpu.vector_store %arg5[%c0_13, %c32], %30 {strides = array<i32>} : memref<8x64xbf16, #tpu.memory_space<vmem>>, vector<1x32xbf16>,
    %32 = vector.extract_strided_slice %24 {offsets = [0, 0], sizes = [7, 32], strides = [1, 1]} : vector<8x32xf32> to vector<7x32xf32>
    %33 = vector.extract_strided_slice %24 {offsets = [1, 0], sizes = [7, 32], strides = [1, 1]} : vector<8x32xf32> to vector<7x32xf32>
    %34 = arith.subf %32, %33 : vector<7x32xf32>
    %35 = arith.truncf %34 : vector<7x32xf32> to vector<7x32xbf16>
    %c1 = arith.constant 1 : index
    %c32_14 = arith.constant 32 : index
    %36 = vector.load %arg5[%c1, %c32_14] : memref<8x64xbf16, #tpu.memory_space<vmem>>, vector<7x32xbf16>
    tpu.vector_store %arg5[%c1, %c32_14], %35 {strides = array<i32>} : memref<8x64xbf16, #tpu.memory_space<vmem>>, vector<7x32xbf16>,
    %37 = vector.extract_strided_slice %24 {offsets = [7, 0], sizes = [1, 32], strides = [1, 1]} : vector<8x32xf32> to vector<1x32xf32>
    %c0_15 = arith.constant 0 : index
    %c0_16 = arith.constant 0 : index
    %38 = vector.load %arg6[%c0_15, %c0_16] : memref<1x32xf32, #tpu.memory_space<vmem>>, vector<1x32xf32>
    tpu.vector_store %arg6[%c0_15, %c0_16], %37 {strides = array<i32>} : memref<1x32xf32, #tpu.memory_space<vmem>>, vector<1x32xf32>,
    return
  }
  func.func @transform_0(%arg0: i32) -> (i32, i32) {
    %c0_i32 = arith.constant 0 : i32
    %c0_i32_0 = arith.constant 0 : i32
    %c0_i32_1 = arith.constant 0 : i32
    return %c0_i32, %c0_i32_0 : i32, i32
  }
  func.func @transform_1(%arg0: i32) -> (i32, i32) {
    %c0_i32 = arith.constant 0 : i32
    %c0_i32_0 = arith.constant 0 : i32
    %c0_i32_1 = arith.constant 0 : i32
    return %c0_i32, %c0_i32_0 : i32, i32
  }
  func.func @transform_2(%arg0: i32) -> (i32, i32) {
    %c0_i32 = arith.constant 0 : i32
    %c0_i32_0 = arith.constant 0 : i32
    %c0_i32_1 = arith.constant 0 : i32
    return %c0_i32, %c0_i32_0 : i32, i32
  }
  func.func @transform_3(%arg0: i32) -> (i32, i32) {
    %c0_i32 = arith.constant 0 : i32
    %c0_i32_0 = arith.constant 0 : i32
    %c0_i32_1 = arith.constant 0 : i32
    return %c0_i32, %c0_i32_0 : i32, i32
  }
  func.func @transform_4(%arg0: i32) -> (i32, i32) {
    %c0_i32 = arith.constant 0 : i32
    %c0_i32_0 = arith.constant 0 : i32
    %c0_i32_1 = arith.constant 0 : i32
    return %c0_i32, %c0_i32_0 : i32, i32
  }
  func.func @transform_5(%arg0: i32) -> (i32, i32) {
    %c0_i32 = arith.constant 0 : i32
    %c0_i32_0 = arith.constant 0 : i32
    %c0_i32_1 = arith.constant 0 : i32
    return %c0_i32, %c0_i32_0 : i32, i32
  }
}

</mosaic_0001>

<llo_original>
// kernel: tpu_custom_call.1
$region0: #{tpu_custom_call.1}
  #allocation0 [shape = 'u32[]', space=smem, size = 0x4, offset = 0x4, fixed_abs, tag = 'smem constant byte address 0x4 - core index']
  #allocation1 [shape = 'u32[144,128]{1,0:T(1,128)}', space=vmem, size = 0x12000, scoped, tag = 'internal scratch']
  %s0 = inlined_call_operand.hbm [shape: f32[8,32], index: 0, kind: input, shape index: {}]
  %s1 = inlined_call_operand.hbm [shape: f32[1,32], index: 1, kind: input, shape index: {}]
  %s2 = inlined_call_operand.hbm [shape: f32[1,32], index: 2, kind: input, shape index: {}]
  %s3 = inlined_call_operand.hbm [shape: f32[1,32], index: 3, kind: input, shape index: {}]
  %s4 = inlined_call_operand.hbm [shape: bf16[8,64], index: 4, kind: output, shape index: {0}]
  %s5 = inlined_call_operand.hbm [shape: f32[1,32], index: 5, kind: output, shape index: {1}]
  %6 = xla_tuple %s4, %s5
  %s7 = sld [smem:[#allocation0]]
  $region50: #{tpu_custom_call.1} parent=0
    _
  %s9 = ssub.s32 1, %s7
  %s10 = scalar_select 0, %s9, %s7
  $region1: #{tpu_custom_call.1} parent=0
    #allocation2 [shape = 'u8[4096]{0}', space=vmem, size = 0x1000, scoped, tag = 'input window, operand 0, single buffered']
    #allocation3 [shape = 's32[1]{0}', space=sflag, size = 0x4, scoped, tag = 'scoped memory for tpu_custom_call.1']
    #allocation4 [shape = 's32[1]{0}', space=sflag, size = 0x4, scoped, tag = 'scoped memory for tpu_custom_call.1']
    #allocation5 [shape = 'u8[512]{0}', space=vmem, size = 0x400, scoped, tag = 'input window, operand 1, single buffered']
    #allocation6 [shape = 's32[1]{0}', space=sflag, size = 0x4, scoped, tag = 'scoped memory for tpu_custom_call.1']
    #allocation7 [shape = 'u8[512]{0}', space=vmem, size = 0x400, scoped, tag = 'input window, operand 2, single buffered']
    #allocation8 [shape = 'u8[512]{0}', space=vmem, size = 0x400, scoped, tag = 'input window, operand 3, single buffered']
    #allocation9 [shape = 's32[1]{0}', space=sflag, size = 0x4, scoped, tag = 'scoped memory for tpu_custom_call.1']
    #allocation10 [shape = 'u8[2048]{0}', space=vmem, size = 0x800, scoped, tag = 'output window, operand 0, single buffered']
    #allocation11 [shape = 'u8[512]{0}', space=vmem, size = 0x400, scoped, tag = 'output window, operand 1, single buffered']
    #allocation12 [shape = 's32[1]{0}', space=sflag, size = 0x4, scoped, tag = 'scoped memory for tpu_custom_call.1']
    %11 = vsyncpa [#allocation3], 0
    %12 = vsyncpa [#allocation6], 0
    %13 = vsyncpa [#allocation9], 0
    %14 = vsyncpa [#allocation4], 0
    %15 = vsyncpa [#allocation12], 0
    // Predicated region
    $region2: #{tpu_custom_call.1} parent=1 // pred_check
      _
    $region3: #{tpu_custom_call.1} parent=1 // pred_check_branch
      %17 = sbr.rel (0) target = $region5
    $region4: #{tpu_custom_call.1} parent=1 // pred_region
      %s19 = ssub.s32 128, 128
      %20 = vsyncadd [#allocation3], %s19
      %s22 = sshll.u32 [#allocation2], 4
      %s23 = int_to_ptr.vmem [resolvable:$true] %s22
      %25 = dma.hbm_to_vmem [thread:$0]  %s0, 128, %s23, [#allocation3]
    $region5: #{tpu_custom_call.1} parent=1 // pred_fallthru
      _
    // Predicated region
    $region6: #{tpu_custom_call.1} parent=1 // pred_check
      _
    $region7: #{tpu_custom_call.1} parent=1 // pred_check_branch
      %27 = sbr.rel (0) target = $region9
    $region8: #{tpu_custom_call.1} parent=1 // pred_region
      %s29 = ssub.s32 16, 16
      %30 = vsyncadd [#allocation6], %s29
      %s32 = sshll.u32 [#allocation5], 4
      %s33 = int_to_ptr.vmem [resolvable:$true] %s32
      %35 = dma.hbm_to_vmem [thread:$0]  %s1, 16, %s33, [#allocation6]
    $region9: #{tpu_custom_call.1} parent=1 // pred_fallthru
      _
    // Predicated region
    $region10: #{tpu_custom_call.1} parent=1 // pred_check
      _
    $region11: #{tpu_custom_call.1} parent=1 // pred_check_branch
      %37 = sbr.rel (0) target = $region13
    $region12: #{tpu_custom_call.1} parent=1 // pred_region
      %s39 = ssub.s32 16, 16
      %40 = vsyncadd [#allocation6], %s39
      %s42 = sshll.u32 [#allocation7], 4
      %s43 = int_to_ptr.vmem [resolvable:$true] %s42
      %45 = dma.hbm_to_vmem [thread:$0]  %s2, 16, %s43, [#allocation6]
    $region13: #{tpu_custom_call.1} parent=1 // pred_fallthru
      _
    // Predicated region
    $region14: #{tpu_custom_call.1} parent=1 // pred_check
      _
    $region15: #{tpu_custom_call.1} parent=1 // pred_check_branch
      %47 = sbr.rel (0) target = $region17
    $region16: #{tpu_custom_call.1} parent=1 // pred_region
      %s49 = ssub.s32 16, 16
      %50 = vsyncadd [#allocation9], %s49
      %s52 = sshll.u32 [#allocation8], 4
      %s53 = int_to_ptr.vmem [resolvable:$true] %s52
      %55 = dma.hbm_to_vmem [thread:$0]  %s3, 16, %s53, [#allocation9]
    $region17: #{tpu_custom_call.1} parent=1 // pred_fallthru
      _
    // Predicated region
    $region18: #{tpu_custom_call.1} parent=1 // pred_check
      _
    $region19: #{tpu_custom_call.1} parent=1 // pred_check_branch
      %57 = sbr.rel (0) target = $region21
    $region20: #{tpu_custom_call.1} parent=1 // pred_region
      %58 = dma.done [#allocation3], 128
    $region21: #{tpu_custom_call.1} parent=1 // pred_fallthru
      _
    // Predicated region
    $region22: #{tpu_custom_call.1} parent=1 // pred_check
      _
    $region23: #{tpu_custom_call.1} parent=1 // pred_check_branch
      %60 = sbr.rel (0) target = $region25
    $region24: #{tpu_custom_call.1} parent=1 // pred_region
      %61 = dma.done [#allocation6], 16
    $region25: #{tpu_custom_call.1} parent=1 // pred_fallthru
      _
    // Predicated region
    $region26: #{tpu_custom_call.1} parent=1 // pred_check
      _
    $region27: #{tpu_custom_call.1} parent=1 // pred_check_branch
      %63 = sbr.rel (0) target = $region29
    $region28: #{tpu_custom_call.1} parent=1 // pred_region
      %64 = dma.done [#allocation6], 16
    $region29: #{tpu_custom_call.1} parent=1 // pred_fallthru
      _
    // Predicated region
    $region30: #{tpu_custom_call.1} parent=1 // pred_check
      _
    $region31: #{tpu_custom_call.1} parent=1 // pred_check_branch
      %66 = sbr.rel (0) target = $region33
    $region32: #{tpu_custom_call.1} parent=1 // pred_region
      %67 = dma.done [#allocation9], 16
    $region33: #{tpu_custom_call.1} parent=1 // pred_fallthru
      _
    %v68 = vld [vmem:[#allocation2] sm:$0xff]
    %vm69 = vcmask 261120
    %v70 = vsel %vm69, %v68, 0.0
    %71 = vadd.xlane.f32.xlu0 %v70
    %v72 = vpop.xlane.xlu0 %71
    %v73 = vrcp.pop 32.0
    %v74 = vmul.f32 %v72, %v73
    %v75 = vsub.f32 %v68, %v74
    %v76 = vmul.f32 %v75, %v75
    %v77 = vsel %vm69, %v76, 0.0
    %78 = vadd.xlane.f32.xlu0 %v77
    %v79 = vpop.xlane.xlu0 %78
    %v80 = vmul.f32 %v79, %v73
    %v81 = vadd.f32 %v80, 1e-05
    %v82 = vrsqrt.pop %v81
    %v83 = vmul.f32 %v75, %v82
    %v84 = vld [vmem:[#allocation7] sm:$0x1]
    %v86 = vlaneseq
    %v87 = vshrl.u32 %v86, 7
    %v88 = vsub.s32 0, %v87
    %v89 = vrot.slane %v84, %v88
    %v91 = vmul.f32 %v83, %v89
    %v92 = vld [vmem:[#allocation8] sm:$0x1]
    %v94 = vlaneseq
    %v95 = vshrl.u32 %v94, 7
    %v96 = vsub.s32 0, %v95
    %v97 = vrot.slane %v92, %v96
    %v99 = vadd.f32 %v91, %v97
    %v100 = vpack.c.bf16 %v99, %v99
    %vm101 = vcmask 257024
    %102 = vst.msk [vmem:[#allocation10] sm:$0xf] %vm101, %v100
    %v103 = vld [vmem:[#allocation5] sm:$0x1]
    %v104 = vsub.f32 %v103, %v99
    %v105 = vpack.c.bf16 %v104, %v104
    %v107 = vunpack.c.l.b16 %v105
    %v108 = vpack.c.b16 %v107, %v107
    %109 = vrot.lane.b32.xlu0 %v108, 32
    %v110 = vpop.permute.xlu0 %109
    %vm112 = vcmask 516352
    %vm113 = vsmask.f32 256
    %vm114 = vmand %vm112, %vm113
    %v115 = vld [vmem:[#allocation10] sm:$0x1]
    %v116 = vsel %vm114, %v110, %v115
    %117 = vst [vmem:[#allocation10] sm:$0x1] %v116
    %v119 = vrot.slane %v99, 1
    %v121 = vsub.f32 %v99, %v119
    %v122 = vpack.c.bf16 %v121, %v121
    %v124 = vunpack.c.l.b16 %v122
    %v125 = vpack.c.b16 %v124, %v124
    %v127 = vshrl.u32 %v125, 16
    %v129 = vrot.slane %v127, 7
    %v130 = vshll.u32 %v125, 16
    %v132 = vor.u32 %v129, %v130
    %133 = vrot.lane.b32.xlu0 %v132, 32
    %v134 = vpop.permute.xlu0 %133
    %vm136 = vcmask 519424
    %vm137 = vsmask.f32 7938
    %vm138 = vmand %vm136, %vm137
    %v139 = vld [vmem:[#allocation10] sm:$0xf]
    %v140 = vsel %vm138, %v134, %v139
    %141 = vst [vmem:[#allocation10] sm:$0xf] %v140
    %vm142 = vcmask 261127
    %143 = vst.msk [vmem:[#allocation11 - $0x7] sm:$0x80] %vm142, %v99
    // Predicated region
    $region34: #{tpu_custom_call.1} parent=1 // pred_check
      _
    $region35: #{tpu_custom_call.1} parent=1 // pred_check_branch
      %145 = sbr.rel (0) target = $region37
    $region36: #{tpu_custom_call.1} parent=1 // pred_region
      %s147 = ssub.s32 64, 64
      %148 = vsyncadd [#allocation4], %s147
      %s150 = sshll.u32 [#allocation10], 4
      %s151 = int_to_ptr.vmem [resolvable:$true] %s150
      %153 = dma.vmem_to_hbm [thread:$0]  %s151, 64, %s4, [#allocation4]
    $region37: #{tpu_custom_call.1} parent=1 // pred_fallthru
      _
    // Predicated region
    $region38: #{tpu_custom_call.1} parent=1 // pred_check
      _
    $region39: #{tpu_custom_call.1} parent=1 // pred_check_branch
      %155 = sbr.rel (0) target = $region41
    $region40: #{tpu_custom_call.1} parent=1 // pred_region
      %s157 = ssub.s32 16, 16
      %158 = vsyncadd [#allocation12], %s157
      %s160 = sshll.u32 [#allocation11], 4
      %s161 = int_to_ptr.vmem [resolvable:$true] %s160
      %163 = dma.vmem_to_hbm [thread:$0]  %s161, 16, %s5, [#allocation12]
    $region41: #{tpu_custom_call.1} parent=1 // pred_fallthru
      _
    // Predicated region
    $region42: #{tpu_custom_call.1} parent=1 // pred_check
      _
    $region43: #{tpu_custom_call.1} parent=1 // pred_check_branch
      %165 = sbr.rel (0) target = $region45
    $region44: #{tpu_custom_call.1} parent=1 // pred_region
      %166 = dma.done [#allocation4], 64
    $region45: #{tpu_custom_call.1} parent=1 // pred_fallthru
      _
    // Predicated region
    $region46: #{tpu_custom_call.1} parent=1 // pred_check
      _
    $region47: #{tpu_custom_call.1} parent=1 // pred_check_branch
      %168 = sbr.rel (0) target = $region49
    $region48: #{tpu_custom_call.1} parent=1 // pred_region
      %169 = dma.done [#allocation12], 16
    $region49: #{tpu_custom_call.1} parent=1 // pred_fallthru
      _
    %170 = vsyncpa [#allocation3], 1
    %171 = vsyncpa [#allocation6], 1
    %172 = vsyncpa [#allocation9], 1
    %173 = vsyncpa [#allocation4], 1
    %174 = vsyncpa [#allocation12], 1

</llo_original>
